<compile_context>
chip_gen: v7x
topology: tpu7x:2x2x1
jax: 0.10.0
libtpu: 0.0.40
codegen_flags: <defaults>
</compile_context>

<pallas_src>
import functools

import jax
import jax.numpy as jnp
from jax.experimental import pallas as pl
from jax.experimental.pallas import tpu as pltpu


def _mlp_kernel(x_ref, w_ref, *rest, unroll, do_bn, eps):
    """One grid step == `unroll` MLP layers.

    The output BlockSpec returns the same block for every grid step, so o_ref
    is resident in VMEM and acts as the activation carry across steps.  Inside
    a step the activation lives in a local value between the unrolled layers
    (no per-layer carry load/store).
    """
    if do_bn:
        gamma_ref, beta_ref, o_ref = rest
    else:
        (o_ref,) = rest

    step = pl.program_id(0)

    @pl.when(step == 0)
    def _():
        o_ref[...] = x_ref[...]

    x = o_ref[...]                                   # (B, C) f32 carry

    for u in range(unroll):                          # static unroll
        # Linear (no bias): bf16 operands on the MXU, f32 accumulation.
        y = jnp.dot(x.astype(jnp.bfloat16), w_ref[u],
                    preferred_element_type=jnp.float32)          # (B, C) f32

        if do_bn:
            # BatchNorm1d (training mode, biased variance), folded into a
            # single FMA per element:
            #   scale = gamma * rsqrt(var + eps)
            #   bias  = beta  - mean * scale
            # with var computed in one pass as E[y^2] - E[y]^2.
            mean = jnp.mean(y, axis=0, keepdims=True)            # (1, C)
            mean_sq = jnp.mean(y * y, axis=0, keepdims=True)     # (1, C)
            var = mean_sq - mean * mean
            scale = gamma_ref[u] * jax.lax.rsqrt(var + eps)      # (1, C)
            bias = beta_ref[u] - mean * scale                    # (1, C)
            y = y * scale + bias

        x = jnp.maximum(y, 0.0)                                  # ReLU

    o_ref[...] = x

    # TODO(synk): the per-layer host-side `print('layers:{}, std:{}')` and the
    # isnan early-break are host diagnostics / data-dependent control flow;
    # not reproduced in-kernel.


def mlp_forward(x, weights, gammas=None, betas=None, *, do_bn=False,
                eps=1e-5, unroll=4):
    """x: (B, C) f32.  weights: (L, C_out, C_in) torch-layout.
    gammas/betas: (L, C) (only used when do_bn=True)."""
    B, C = x.shape
    L = weights.shape[0]
    unroll = min(unroll, L)
    assert L % unroll == 0, "layers must be divisible by the unroll factor"

    # Glue: pre-transpose to (L, C_in, C_out) so the kernel does x @ w, and
    # cast weights to bf16 (halves weight DMA, native MXU rate).  The kernel
    # accumulates in f32.
    w_t = jnp.transpose(weights, (0, 2, 1)).astype(jnp.bfloat16)

    in_specs = [
        pl.BlockSpec((B, C), lambda s: (0, 0)),              # x (read at step 0)
        pl.BlockSpec((unroll, C, C), lambda s: (s, 0, 0)),   # `unroll` weights/step
    ]
    inputs = [x, w_t]

    if do_bn:
        # Reshape to (L, 1, C) so the block's last-two dims are (1, C):
        # legal tiling and lane-dense loads of the per-layer (1, C) rows.
        g3 = gammas.reshape(L, 1, C)
        b3 = betas.reshape(L, 1, C)
        in_specs += [
            pl.BlockSpec((unroll, 1, C), lambda s: (s, 0, 0)),
            pl.BlockSpec((unroll, 1, C), lambda s: (s, 0, 0)),
        ]
        inputs += [g3, b3]

    kernel = functools.partial(_mlp_kernel, unroll=unroll, do_bn=do_bn, eps=eps)

    return pl.pallas_call(
        kernel,
        out_shape=jax.ShapeDtypeStruct((B, C), jnp.float32),
        grid=(L // unroll,),
        in_specs=in_specs,
        out_specs=pl.BlockSpec((B, C), lambda s: (0, 0)),    # resident carry
        compiler_params=pltpu.CompilerParams(
            dimension_semantics=("arbitrary",),              # layers are sequential
        ),
    )(*inputs)


def _reference_matched(x, weights, gammas, betas, do_bn, eps=1e-5):
    """Mirrors the kernel math exactly (bf16 MXU operands, f32 accumulation,
    folded BatchNorm) for a tight numerical comparison."""
    w_t = jnp.transpose(weights, (0, 2, 1)).astype(jnp.bfloat16)
    for i in range(weights.shape[0]):
        y = jnp.dot(x.astype(jnp.bfloat16), w_t[i],
                    preferred_element_type=jnp.float32)
        if do_bn:
            mean = jnp.mean(y, axis=0, keepdims=True)
            var = jnp.mean(y * y, axis=0, keepdims=True) - mean * mean
            scale = gammas[i] * jax.lax.rsqrt(var + eps)
            bias = betas[i] - mean * scale
            y = y * scale + bias
        x = jnp.maximum(y, 0.0)
    return x


def _reference_f32(x, weights, gammas, betas, do_bn, eps=1e-5):
    """Pure-f32 PyTorch-style forward: Linear(no bias) -> BatchNorm1d -> ReLU."""
    for i in range(weights.shape[0]):
        x = x @ weights[i].T
        if do_bn:
            mean = jnp.mean(x, axis=0, keepdims=True)
            var = jnp.mean((x - mean) ** 2, axis=0, keepdims=True)
            x = (x - mean) * jax.lax.rsqrt(var + eps)
            x = x * gammas[i] + betas[i]
        x = jnp.maximum(x, 0.0)
    return x


if __name__ == "__main__":
    key = jax.random.PRNGKey(0)

    batch = 16          # BatchNorm1d batch statistics need B > 1 (sublane-aligned)
    neural_num = 128    # feature width (lane-aligned)
    layers = 8          # small stand-in for the default 100
    unroll = 4          # layers per grid step -> grid of 2 steps

    kx, kw = jax.random.split(key)
    x = jax.random.normal(kx, (batch, neural_num), dtype=jnp.float32)

    # Deterministic "kaiming" init (fan_in, relu gain): std = sqrt(2 / fan_in).
    w_std = (2.0 / neural_num) ** 0.5
    weights = jax.random.normal(
        kw, (layers, neural_num, neural_num), dtype=jnp.float32) * w_std

    # BatchNorm1d default affine init: gamma = 1, beta = 0.
    gammas = jnp.ones((layers, neural_num), dtype=jnp.float32)
    betas = jnp.zeros((layers, neural_num), dtype=jnp.float32)

    # do_bn=False path (module default) — gamma/beta are not passed / DMA'd.
    out_no_bn = jax.block_until_ready(
        mlp_forward(x, weights, do_bn=False, unroll=unroll))
    # do_bn=True path (BatchNorm inside the kernel).
    out_bn = jax.block_until_ready(
        mlp_forward(x, weights, gammas, betas, do_bn=True, unroll=unroll))

    assert out_no_bn.shape == (batch, neural_num)
    assert out_bn.shape == (batch, neural_num)

    # Tight check vs a reference that mirrors the kernel math.
    ref_no_bn_m = _reference_matched(x, weights, gammas, betas, do_bn=False)
    ref_bn_m = _reference_matched(x, weights, gammas, betas, do_bn=True)
    assert jnp.allclose(out_no_bn, ref_no_bn_m, atol=1e-2, rtol=1e-2)
    assert jnp.allclose(out_bn, ref_bn_m, atol=1e-2, rtol=1e-2)

    # Loose check vs the pure-f32 PyTorch-style forward (bf16 inputs add
    # ~0.3% relative error per layer, compounded over `layers`).
    ref_no_bn = _reference_f32(x, weights, gammas, betas, do_bn=False)
    ref_bn = _reference_f32(x, weights, gammas, betas, do_bn=True)
    assert jnp.allclose(out_no_bn, ref_no_bn, atol=0.1, rtol=0.1)
    assert jnp.allclose(out_bn, ref_bn, atol=0.1, rtol=0.1)

    print("KERNEL_OK")
</pallas_src>

<mosaic_0001>
module attributes {stable_mosaic.version = 11 : i64} {
  func.func @_mlp_kernel(%arg0: i32, %arg1: memref<16x128xf32, #tpu.memory_space<vmem>>, %arg2: memref<4x128x128xbf16, #tpu.memory_space<vmem>>, %arg3: memref<16x128xf32, #tpu.memory_space<vmem>>) attributes {dimension_semantics = [#tpu.dimension_semantics<arbitrary>], iteration_bounds = array<i64: 2>, scalar_prefetch = 0 : i64, scratch_operands = 0 : i64, tpu.core_type = #tpu.core_type<tc>, window_params = [{pipeline_mode = #tpu.pipeline_mode<synchronous>, transform_indices = @transform_0, window_bounds = array<i64: 16, 128>}, {transform_indices = @transform_1, window_bounds = array<i64: 4, 128, 128>}, {pipeline_mode = #tpu.pipeline_mode<synchronous>, transform_indices = @transform_2, window_bounds = array<i64: 16, 128>}]} {
    %c0_i32 = arith.constant 0 : i32
    %0 = arith.cmpi eq, %arg0, %c0_i32 : i32
    %1 = arith.extui %0 : i1 to i32
    %c0_i32_0 = arith.constant 0 : i32
    %2 = arith.cmpi ne, %1, %c0_i32_0 : i32
    scf.if %2 {
      %c0_20 = arith.constant 0 : index
      %c0_21 = arith.constant 0 : index
      %29 = vector.load %arg1[%c0_20, %c0_21] : memref<16x128xf32, #tpu.memory_space<vmem>>, vector<16x128xf32>
      %c0_22 = arith.constant 0 : index
      %c0_23 = arith.constant 0 : index
      %30 = vector.load %arg3[%c0_22, %c0_23] : memref<16x128xf32, #tpu.memory_space<vmem>>, vector<16x128xf32>
      tpu.vector_store %arg3[%c0_22, %c0_23], %29 {strides = array<i32>} : memref<16x128xf32, #tpu.memory_space<vmem>>, vector<16x128xf32>,
    } else {
    }
    %c0 = arith.constant 0 : index
    %c0_1 = arith.constant 0 : index
    %3 = vector.load %arg3[%c0, %c0_1] : memref<16x128xf32, #tpu.memory_space<vmem>>, vector<16x128xf32>
    %4 = arith.truncf %3 : vector<16x128xf32> to vector<16x128xbf16>
    %c0_2 = arith.constant 0 : index
    %c0_3 = arith.constant 0 : index
    %c0_4 = arith.constant 0 : index
    %5 = vector.load %arg2[%c0_2, %c0_3, %c0_4] : memref<4x128x128xbf16, #tpu.memory_space<vmem>>, vector<1x128x128xbf16>
    %6 = vector.shape_cast %5 : vector<1x128x128xbf16> to vector<128x128xbf16>
    %cst = arith.constant dense<0.000000e+00> : vector<16x128xf32>
    %7 = tpu.matmul %4, %6, %cst {dimension_numbers = #tpu.dot_dimension_numbers<[1], [0], [0], [1], [0, 0, 1, 1], [], []>} : vector<16x128xbf16>, vector<128x128xbf16>, vector<16x128xf32> -> vector<16x128xf32>
    %cst_5 = arith.constant 0.000000e+00 : f32
    %8 = vector.broadcast %cst_5 : f32 to vector<16x128xf32>
    %9 = arith.maximumf %7, %8 : vector<16x128xf32>
    %10 = arith.truncf %9 : vector<16x128xf32> to vector<16x128xbf16>
    %c1 = arith.constant 1 : index
    %c0_6 = arith.constant 0 : index
    %c0_7 = arith.constant 0 : index
    %11 = vector.load %arg2[%c1, %c0_6, %c0_7] : memref<4x128x128xbf16, #tpu.memory_space<vmem>>, vector<1x128x128xbf16>
    %12 = vector.shape_cast %11 : vector<1x128x128xbf16> to vector<128x128xbf16>
    %cst_8 = arith.constant dense<0.000000e+00> : vector<16x128xf32>
    %13 = tpu.matmul %10, %12, %cst_8 {dimension_numbers = #tpu.dot_dimension_numbers<[1], [0], [0], [1], [0, 0, 1, 1], [], []>} : vector<16x128xbf16>, vector<128x128xbf16>, vector<16x128xf32> -> vector<16x128xf32>
    %cst_9 = arith.constant 0.000000e+00 : f32
    %14 = vector.broadcast %cst_9 : f32 to vector<16x128xf32>
    %15 = arith.maximumf %13, %14 : vector<16x128xf32>
    %16 = arith.truncf %15 : vector<16x128xf32> to vector<16x128xbf16>
    %c2 = arith.constant 2 : index
    %c0_10 = arith.constant 0 : index
    %c0_11 = arith.constant 0 : index
    %17 = vector.load %arg2[%c2, %c0_10, %c0_11] : memref<4x128x128xbf16, #tpu.memory_space<vmem>>, vector<1x128x128xbf16>
    %18 = vector.shape_cast %17 : vector<1x128x128xbf16> to vector<128x128xbf16>
    %cst_12 = arith.constant dense<0.000000e+00> : vector<16x128xf32>
    %19 = tpu.matmul %16, %18, %cst_12 {dimension_numbers = #tpu.dot_dimension_numbers<[1], [0], [0], [1], [0, 0, 1, 1], [], []>} : vector<16x128xbf16>, vector<128x128xbf16>, vector<16x128xf32> -> vector<16x128xf32>
    %cst_13 = arith.constant 0.000000e+00 : f32
    %20 = vector.broadcast %cst_13 : f32 to vector<16x128xf32>
    %21 = arith.maximumf %19, %20 : vector<16x128xf32>
    %22 = arith.truncf %21 : vector<16x128xf32> to vector<16x128xbf16>
    %c3 = arith.constant 3 : index
    %c0_14 = arith.constant 0 : index
    %c0_15 = arith.constant 0 : index
    %23 = vector.load %arg2[%c3, %c0_14, %c0_15] : memref<4x128x128xbf16, #tpu.memory_space<vmem>>, vector<1x128x128xbf16>
    %24 = vector.shape_cast %23 : vector<1x128x128xbf16> to vector<128x128xbf16>
    %cst_16 = arith.constant dense<0.000000e+00> : vector<16x128xf32>
    %25 = tpu.matmul %22, %24, %cst_16 {dimension_numbers = #tpu.dot_dimension_numbers<[1], [0], [0], [1], [0, 0, 1, 1], [], []>} : vector<16x128xbf16>, vector<128x128xbf16>, vector<16x128xf32> -> vector<16x128xf32>
    %cst_17 = arith.constant 0.000000e+00 : f32
    %26 = vector.broadcast %cst_17 : f32 to vector<16x128xf32>
    %27 = arith.maximumf %25, %26 : vector<16x128xf32>
    %c0_18 = arith.constant 0 : index
    %c0_19 = arith.constant 0 : index
    %28 = vector.load %arg3[%c0_18, %c0_19] : memref<16x128xf32, #tpu.memory_space<vmem>>, vector<16x128xf32>
    tpu.vector_store %arg3[%c0_18, %c0_19], %27 {strides = array<i32>} : memref<16x128xf32, #tpu.memory_space<vmem>>, vector<16x128xf32>,
    return
  }
  func.func @transform_0(%arg0: i32) -> (i32, i32) {
    %c0_i32 = arith.constant 0 : i32
    %c0_i32_0 = arith.constant 0 : i32
    %c0_i32_1 = arith.constant 0 : i32
    return %c0_i32, %c0_i32_0 : i32, i32
  }
  func.func @transform_1(%arg0: i32) -> (i32, i32, i32) {
    %c0_i32 = arith.constant 0 : i32
    %c0_i32_0 = arith.constant 0 : i32
    %c0_i32_1 = arith.constant 0 : i32
    return %arg0, %c0_i32, %c0_i32_0 : i32, i32, i32
  }
  func.func @transform_2(%arg0: i32) -> (i32, i32) {
    %c0_i32 = arith.constant 0 : i32
    %c0_i32_0 = arith.constant 0 : i32
    %c0_i32_1 = arith.constant 0 : i32
    return %c0_i32, %c0_i32_0 : i32, i32
  }
}

</mosaic_0001>

<llo_original>
// kernel: tpu_custom_call.1
$region0: #{tpu_custom_call.1}
  #allocation0 [shape = 'u32[]', space=smem, size = 0x4, offset = 0x4, fixed_abs, tag = 'smem constant byte address 0x4 - core index']
  #allocation1 [shape = 'u32[144,128]{1,0:T(1,128)}', space=vmem, size = 0x12000, scoped, tag = 'internal scratch']
  %s0 = inlined_call_operand.hbm [shape: f32[16,128], index: 0, kind: input, shape index: {}]
  %s1 = inlined_call_operand.hbm [shape: bf16[8,128,128], index: 1, kind: input, shape index: {}]
  %s2 = inlined_call_operand.hbm [shape: f32[16,128], index: 2, kind: output, shape index: {}]
  %s3 = sld [smem:[#allocation0]]
  $region53: #{tpu_custom_call.1} parent=0
    _
  %s5 = ssub.s32 1, %s3
  %s6 = scalar_select 0, %s5, %s3
  $region1: #{tpu_custom_call.1} parent=0
    #allocation2 [shape = 'u8[8192]{0}', space=vmem, size = 0x2000, scoped, tag = 'input window, operand 0, single buffered']
    #allocation3 [shape = 's32[2]{0}', space=sflag, size = 0x8, scoped, tag = 'scoped memory for tpu_custom_call.1']
    #allocation4 [shape = 's32[2]{0}', space=sflag, size = 0x8, scoped, tag = 'scoped memory for tpu_custom_call.1']
    #allocation5 [shape = 'u8[262144]{0}', space=vmem, size = 0x40000, scoped, tag = 'input window, operand 1']
    #allocation6 [shape = 's32[2]{0}', space=sflag, size = 0x8, scoped, tag = 'scoped memory for tpu_custom_call.1']
    #allocation7 [shape = 'u8[8192]{0}', space=vmem, size = 0x2000, scoped, tag = 'output window, operand 0, single buffered']
    %7 = vsyncpa [#allocation3], 0
    %8 = vsyncpa [#allocation6], 0
    %s9 = scalar_lea.sflag [#allocation6], 1
    %10 = vsyncpa %s9, 0
    %11 = vsyncpa [#allocation4], 0
    loop: start=0, step=1, limit=4
    $region2: #{tpu_custom_call.1} parent=1 // loop_pre_header
      _
    $region3: #{tpu_custom_call.1} parent=1 // loop_header
      %s13 = sphi 0, %s17
      %p14 = scmp.ge.s32.totalorder %s13, 4
      %s21 = sphi 0, %s21
      %s23 = sphi 0, %s21
      %s24 = sphi 0, %s23
      %s38 = sphi 0, %s24
      %s44 = sphi 0, %s46
      %s47 = sphi 0, %s44
      %s48 = sphi 0, %s47
      %s64 = sphi 0, %s48
      %s68 = sphi 0, %s68
      %s70 = sphi 0, %s68
      %s71 = sphi 0, %s70
      %s85 = sphi 0, %s71
    $region4: #{tpu_custom_call.1} parent=1 // loop_header_branch
      %16 = sbr.rel (%p14) target = $region8
    $region5: #{tpu_custom_call.1} parent=1 // loop_body
      %s18 = ssub.s32 %s13, 1
      %s19 = ssub.s32 %s13, 2
      %s20 = sadd.s32 %s13, 1
      %s22 = sadd.s32 %s21, 1
      %p25 = scmp.eq.s32.totalorder %s13, 1
      %p26 = scmp.ne.s32.totalorder %s21, %s23
      %p27 = scmp.eq.s32.totalorder %s13, 0
      %p28 = por %p26, %p27
      %p29 = scmp.ne.s32.totalorder %s21, %s23
      %p30 = scmp.eq.s32.totalorder %s18, 1
      %p31 = por %p29, %p30
      %p32 = scmp.ne.s32.totalorder %s23, %s24
      %p33 = scmp.eq.s32.totalorder %s18, 0
      %p34 = por %p32, %p33
      %p35 = scmp.ne.s32.totalorder %s23, %s24
      %p36 = scmp.eq.s32.totalorder %s19, 1
      %p37 = por %p35, %p36
      %p39 = scmp.ne.s32.totalorder %s24, %s38
      %p40 = scmp.eq.s32.totalorder %s19, 0
      %p41 = por %p39, %p40
      %s42 = ssub.s32 %s13, %s20
      %p43 = scmp.eq.s32.totalorder %s42, 0
      %s45 = sadd.s32 %s44, 1
      %s46 = scalar_select %p43, %s44, %s45
      %p49 = pneg %p43
      %p50 = scmp.eq.s32.totalorder %s13, 1
      %p51 = por %p49, %p50
      %p52 = scmp.ne.s32.totalorder %s44, %s47
      %p53 = scmp.eq.s32.totalorder %s13, 0
      %p54 = por %p52, %p53
      %p55 = scmp.ne.s32.totalorder %s44, %s47
      %p56 = scmp.eq.s32.totalorder %s18, 1
      %p57 = por %p55, %p56
      %p58 = scmp.ne.s32.totalorder %s47, %s48
      %p59 = scmp.eq.s32.totalorder %s18, 0
      %p60 = por %p58, %p59
      %p61 = scmp.ne.s32.totalorder %s47, %s48
      %p62 = scmp.eq.s32.totalorder %s19, 1
      %p63 = por %p61, %p62
      %p65 = scmp.ne.s32.totalorder %s48, %s64
      %p66 = scmp.eq.s32.totalorder %s19, 0
      %p67 = por %p65, %p66
      %s69 = sadd.s32 %s68, 1
      %p72 = scmp.eq.s32.totalorder %s13, 1
      %p73 = scmp.ne.s32.totalorder %s68, %s70
      %p74 = scmp.eq.s32.totalorder %s13, 0
      %p75 = por %p73, %p74
      %p76 = scmp.ne.s32.totalorder %s68, %s70
      %p77 = scmp.eq.s32.totalorder %s18, 1
      %p78 = por %p76, %p77
      %p79 = scmp.ne.s32.totalorder %s70, %s71
      %p80 = scmp.eq.s32.totalorder %s18, 0
      %p81 = por %p79, %p80
      %p82 = scmp.ne.s32.totalorder %s70, %s71
      %p83 = scmp.eq.s32.totalorder %s19, 1
      %p84 = por %p82, %p83
      %p86 = scmp.ne.s32.totalorder %s71, %s85
      %p87 = scmp.eq.s32.totalorder %s19, 0
      %p88 = por %p86, %p87
      %p89 = scmp.le.s32.totalorder 1, %s13
      %p90 = scmp.lt.s32.totalorder %s13, 3
      %p91 = pnand %p89, %p90
      %p92 = pneg %p91
      // Predicated region
      $region9: #{tpu_custom_call.1} parent=5 // pred_check
        _
      $region10: #{tpu_custom_call.1} parent=5 // pred_check_branch
        %94 = sbr.rel (%p91) target = $region12
      $region11: #{tpu_custom_call.1} parent=5 // pred_region
        %s95 = ssub.s32 %s13, 1
        // Predicated region
        $region13: #{tpu_custom_call.1} parent=11 // pred_check
          %p96 = pneg %p34
        $region14: #{tpu_custom_call.1} parent=11 // pred_check_branch
          %98 = sbr.rel (%p96) target = $region16
        $region15: #{tpu_custom_call.1} parent=11 // pred_region
          %s100 = ssub.s32 256, 256
          %101 = vsyncadd [#allocation3], %s100
          %s102 = sshll.u32 [#allocation2], 4
          %s103 = int_to_ptr.vmem [resolvable:$true] %s102
          %108 = dma.hbm_to_vmem [thread:$0]  %s0, 256, %s103, [#allocation3], 128, 128, 8
        $region16: #{tpu_custom_call.1} parent=11 // pred_fallthru
          _
      $region12: #{tpu_custom_call.1} parent=5 // pred_fallthru
        _
      %p109 = scmp.lt.s32.totalorder %s13, 2
      // Predicated region
      $region17: #{tpu_custom_call.1} parent=5 // pred_check
        %p110 = pneg %p109
      $region18: #{tpu_custom_call.1} parent=5 // pred_check_branch
        %112 = sbr.rel (%p110) target = $region20
      $region19: #{tpu_custom_call.1} parent=5 // pred_region
        // Predicated region
        $region21: #{tpu_custom_call.1} parent=19 // pred_check
          %p113 = pneg %p54
        $region22: #{tpu_custom_call.1} parent=19 // pred_check_branch
          %115 = sbr.rel (%p113) target = $region24
        $region23: #{tpu_custom_call.1} parent=19 // pred_region
          %s116 = sand.u32 %s44, 1
          %s117 = scalar_lea.sflag [#allocation6], %s116
          %s118 = sand.u32 %s44, 1
          %s119 = smul.addr %s118, 256
          %s120 = scalar_lea.vmem [#allocation5], %s119
          %s121 = smul.u32 4, %s13
          %s123 = ssub.s32 4096, 4096
          %124 = vsyncadd %s117, %s123
          %s125 = smul.addr %s121, 16
          %s126 = smul.addr %s125, 64
          %s127 = scalar_lea.hbm %s1, %s126
          %s128 = sshll.u32 %s120, 4
          %s129 = int_to_ptr.vmem [resolvable:$true] %s128
          %134 = dma.hbm_to_vmem [thread:$0]  %s127, 4096, %s129, %s117, 64, 64, 4
        $region24: #{tpu_custom_call.1} parent=19 // pred_fallthru
          _
      $region20: #{tpu_custom_call.1} parent=5 // pred_fallthru
        _
      %p135 = scmp.le.s32.totalorder 1, %s13
      %p136 = scmp.lt.s32.totalorder %s13, 3
      %p137 = pnand %p135, %p136
      %p138 = pneg %p137
      // Predicated region
      $region25: #{tpu_custom_call.1} parent=5 // pred_check
        _
      $region26: #{tpu_custom_call.1} parent=5 // pred_check_branch
        %140 = sbr.rel (%p137) target = $region28
      $region27: #{tpu_custom_call.1} parent=5 // pred_region
        %s141 = ssub.s32 %s13, 1
        // Predicated region
        $region29: #{tpu_custom_call.1} parent=27 // pred_check
          %p142 = pneg %p34
        $region30: #{tpu_custom_call.1} parent=27 // pred_check_branch
          %144 = sbr.rel (%p142) target = $region32
        $region31: #{tpu_custom_call.1} parent=27 // pred_region
          %145 = dma.done [#allocation3], 256
        $region32: #{tpu_custom_call.1} parent=27 // pred_fallthru
          _
        %s146 = sand.u32 %s47, 1
        %s147 = scalar_lea.sflag [#allocation6], %s146
        %s148 = sand.u32 %s47, 1
        %s149 = smul.addr %s148, 256
        %s150 = scalar_lea.vmem [#allocation5], %s149
        // Predicated region
        $region33: #{tpu_custom_call.1} parent=27 // pred_check
          %p151 = pneg %p60
        $region34: #{tpu_custom_call.1} parent=27 // pred_check_branch
          %153 = sbr.rel (%p151) target = $region36
        $region35: #{tpu_custom_call.1} parent=27 // pred_region
          %154 = dma.done %s147, 4096
        $region36: #{tpu_custom_call.1} parent=27 // pred_fallthru
          _
        %p155 = pneg %p34
        %p156 = pneg %p31
        %s157 = sand.u32 %s47, 1
        %s158 = scalar_lea.sflag [#allocation6], %s157
        %s159 = sand.u32 %s47, 1
        %s160 = smul.addr %s159, 256
        %s161 = scalar_lea.vmem [#allocation5], %s160
        %p162 = pneg %p60
        %p163 = pneg %p57
        %p164 = pneg %p81
        %p165 = pneg %p78
        %s166 = smul.u32 4, %s18
        %p168 = scmp.eq.s32.totalorder %s18, 0
        // Predicated region
        $region37: #{tpu_custom_call.1} parent=27 // pred_check
          %p169 = pneg %p168
        $region38: #{tpu_custom_call.1} parent=27 // pred_check_branch
          %171 = sbr.rel (%p169) target = $region40
        $region39: #{tpu_custom_call.1} parent=27 // pred_region
          %v172 = vld [vmem:[#allocation2] sm:$0xff]
          %v173 = vld [vmem:[#allocation2 + $0x8] sm:$0xff]
          %174 = vst [vmem:[#allocation7] sm:$0xff] %v172
          %175 = vst [vmem:[#allocation7 + $0x8] sm:$0xff] %v173
        $region40: #{tpu_custom_call.1} parent=27 // pred_fallthru
          _
        %v176 = vld [vmem:[#allocation7] sm:$0xff]
        %v177 = vld [vmem:[#allocation7 + $0x8] sm:$0xff]
        %v178 = vpack.c.bf16 %v177, %v176
        %v179 = vld [vmem:[%s150] sm:$0xf]
        %v180 = vld [vmem:[%s150 + $0x4] sm:$0xf]
        %v181 = vld [vmem:[%s150 + $0x8] sm:$0xf]
        %v182 = vld [vmem:[%s150 + $0xc] sm:$0xf]
        %v183 = vld [vmem:[%s150 + $0x10] sm:$0xf]
        %v184 = vld [vmem:[%s150 + $0x14] sm:$0xf]
        %v185 = vld [vmem:[%s150 + $0x18] sm:$0xf]
        %v186 = vld [vmem:[%s150 + $0x1c] sm:$0xf]
        %v187 = vld [vmem:[%s150 + $0x20] sm:$0xf]
        %v188 = vld [vmem:[%s150 + $0x24] sm:$0xf]
        %v189 = vld [vmem:[%s150 + $0x28] sm:$0xf]
        %v190 = vld [vmem:[%s150 + $0x2c] sm:$0xf]
        %v191 = vld [vmem:[%s150 + $0x30] sm:$0xf]
        %v192 = vld [vmem:[%s150 + $0x34] sm:$0xf]
        %v193 = vld [vmem:[%s150 + $0x38] sm:$0xf]
        %v194 = vld [vmem:[%s150 + $0x3c] sm:$0xf]
        %v211 = vunpack.c.l.b16 %v179
        %v212 = vunpack.c.l.b16 %v180
        %v213 = vunpack.c.l.b16 %v181
        %v214 = vunpack.c.l.b16 %v182
        %v215 = vunpack.c.l.b16 %v183
        %v216 = vunpack.c.l.b16 %v184
        %v217 = vunpack.c.l.b16 %v185
        %v218 = vunpack.c.l.b16 %v186
        %v219 = vunpack.c.l.b16 %v187
        %v220 = vunpack.c.l.b16 %v188
        %v221 = vunpack.c.l.b16 %v189
        %v222 = vunpack.c.l.b16 %v190
        %v223 = vunpack.c.l.b16 %v191
        %v224 = vunpack.c.l.b16 %v192
        %v225 = vunpack.c.l.b16 %v193
        %v226 = vunpack.c.l.b16 %v194
        %v227 = vpack.c.b16 %v212, %v211
        %v228 = vpack.c.b16 %v214, %v213
        %v229 = vpack.c.b16 %v216, %v215
        %v230 = vpack.c.b16 %v218, %v217
        %v231 = vpack.c.b16 %v220, %v219
        %v232 = vpack.c.b16 %v222, %v221
        %v233 = vpack.c.b16 %v224, %v223
        %v234 = vpack.c.b16 %v226, %v225
        %243 = vmatprep.subr.bf16.mxu0 0
        %244 = vmatpush1.bf16.msra.mxu0 %v227
        %245 = vmatprep.subr.bf16.mxu0 0
        %246 = vmatpush1.bf16.msra.mxu0 %v228
        %247 = vmatprep.subr.bf16.mxu0 0
        %248 = vmatpush1.bf16.msra.mxu0 %v229
        %249 = vmatprep.subr.bf16.mxu0 0
        %250 = vmatpush1.bf16.msra.mxu0 %v230
        %251 = vmatprep.subr.bf16.mxu0 0
        %252 = vmatpush1.bf16.msra.mxu0 %v231
        %253 = vmatprep.subr.bf16.mxu0 0
        %254 = vmatpush1.bf16.msra.mxu0 %v232
        %255 = vmatprep.subr.bf16.mxu0 0
        %256 = vmatpush1.bf16.msra.mxu0 %v233
        %257 = vmatprep.subr.bf16.mxu0 0
        %258 = vmatpush1.bf16.msra.mxu0 %v234
        %259 = vmatprep.subr.bf16.mxu0 0
        %260 = vmatpush1.bf16.msra.mxu0 0
        %261 = vmatprep.subr.bf16.mxu0 0
        %262 = vmatpush1.bf16.msra.mxu0 0
        %263 = vmatprep.subr.bf16.mxu0 0
        %264 = vmatpush1.bf16.msra.mxu0 0
        %265 = vmatprep.subr.bf16.mxu0 0
        %266 = vmatpush1.bf16.msra.mxu0 0
        %267 = vmatprep.subr.bf16.mxu0 0
        %268 = vmatpush1.bf16.msra.mxu0 0
        %269 = vmatprep.subr.bf16.mxu0 0
        %270 = vmatpush1.bf16.msra.mxu0 0
        %271 = vmatprep.subr.bf16.mxu0 0
        %272 = vmatpush1.bf16.msra.mxu0 0
        %273 = vmatprep.subr.bf16.mxu0 0
        %274 = vmatpush1.bf16.msra.mxu0 0
        %275 = vmatprep.mubr.bf16.mxu0 0
        %276 = vmatmul.mubr.bf16.gmra.mrb[0].mxu0 %v178
        %v277 = vpop.f32.mrb[0].mxu0
        %v278 = vadd.f32 0.0, %v277
        %v279 = vpop.f32.mrb[0].mxu0
        %v280 = vpop.f32.mrb[0].mxu0
        %v281 = vadd.f32 0.0, %v280
        %v282 = vpop.f32.mrb[0].mxu0
        %283 = vdwg.mxu0
        %v284 = vmax.f32 %v278, 0.0
        %v285 = vmax.f32 %v281, 0.0
        %v286 = vpack.c.bf16 %v285, %v284
        %s287 = scalar_lea.vmem %s150, 64 [#allocation5]
        %v288 = vld [vmem:[%s287] sm:$0xf]
        %v289 = vld [vmem:[%s287 + $0x4] sm:$0xf]
        %v290 = vld [vmem:[%s287 + $0x8] sm:$0xf]
        %v291 = vld [vmem:[%s287 + $0xc] sm:$0xf]
        %v292 = vld [vmem:[%s287 + $0x10] sm:$0xf]
        %v293 = vld [vmem:[%s287 + $0x14] sm:$0xf]
        %v294 = vld [vmem:[%s287 + $0x18] sm:$0xf]
        %v295 = vld [vmem:[%s287 + $0x1c] sm:$0xf]
        %v296 = vld [vmem:[%s287 + $0x20] sm:$0xf]
        %v297 = vld [vmem:[%s287 + $0x24] sm:$0xf]
        %v298 = vld [vmem:[%s287 + $0x28] sm:$0xf]
        %v299 = vld [vmem:[%s287 + $0x2c] sm:$0xf]
        %v300 = vld [vmem:[%s287 + $0x30] sm:$0xf]
        %v301 = vld [vmem:[%s287 + $0x34] sm:$0xf]
        %v302 = vld [vmem:[%s287 + $0x38] sm:$0xf]
        %v303 = vld [vmem:[%s287 + $0x3c] sm:$0xf]
        %v320 = vunpack.c.l.b16 %v288
        %v321 = vunpack.c.l.b16 %v289
        %v322 = vunpack.c.l.b16 %v290
        %v323 = vunpack.c.l.b16 %v291
        %v324 = vunpack.c.l.b16 %v292
        %v325 = vunpack.c.l.b16 %v293
        %v326 = vunpack.c.l.b16 %v294
        %v327 = vunpack.c.l.b16 %v295
        %v328 = vunpack.c.l.b16 %v296
        %v329 = vunpack.c.l.b16 %v297
        %v330 = vunpack.c.l.b16 %v298
        %v331 = vunpack.c.l.b16 %v299
        %v332 = vunpack.c.l.b16 %v300
        %v333 = vunpack.c.l.b16 %v301
        %v334 = vunpack.c.l.b16 %v302
        %v335 = vunpack.c.l.b16 %v303
        %v336 = vpack.c.b16 %v321, %v320
        %v337 = vpack.c.b16 %v323, %v322
        %v338 = vpack.c.b16 %v325, %v324
        %v339 = vpack.c.b16 %v327, %v326
        %v340 = vpack.c.b16 %v329, %v328
        %v341 = vpack.c.b16 %v331, %v330
        %v342 = vpack.c.b16 %v333, %v332
        %v343 = vpack.c.b16 %v335, %v334
        %352 = vmatprep.subr.bf16.mxu0 0
        %353 = vmatpush1.bf16.msra.mxu0 %v336
        %354 = vmatprep.subr.bf16.mxu0 0
        %355 = vmatpush1.bf16.msra.mxu0 %v337
        %356 = vmatprep.subr.bf16.mxu0 0
        %357 = vmatpush1.bf16.msra.mxu0 %v338
        %358 = vmatprep.subr.bf16.mxu0 0
        %359 = vmatpush1.bf16.msra.mxu0 %v339
        %360 = vmatprep.subr.bf16.mxu0 0
        %361 = vmatpush1.bf16.msra.mxu0 %v340
        %362 = vmatprep.subr.bf16.mxu0 0
        %363 = vmatpush1.bf16.msra.mxu0 %v341
        %364 = vmatprep.subr.bf16.mxu0 0
        %365 = vmatpush1.bf16.msra.mxu0 %v342
        %366 = vmatprep.subr.bf16.mxu0 0
        %367 = vmatpush1.bf16.msra.mxu0 %v343
        %368 = vmatprep.subr.bf16.mxu0 0
        %369 = vmatpush1.bf16.msra.mxu0 0
        %370 = vmatprep.subr.bf16.mxu0 0
        %371 = vmatpush1.bf16.msra.mxu0 0
        %372 = vmatprep.subr.bf16.mxu0 0
        %373 = vmatpush1.bf16.msra.mxu0 0
        %374 = vmatprep.subr.bf16.mxu0 0
        %375 = vmatpush1.bf16.msra.mxu0 0
        %376 = vmatprep.subr.bf16.mxu0 0
        %377 = vmatpush1.bf16.msra.mxu0 0
        %378 = vmatprep.subr.bf16.mxu0 0
        %379 = vmatpush1.bf16.msra.mxu0 0
        %380 = vmatprep.subr.bf16.mxu0 0
        %381 = vmatpush1.bf16.msra.mxu0 0
        %382 = vmatprep.subr.bf16.mxu0 0
        %383 = vmatpush1.bf16.msra.mxu0 0
        %384 = vmatprep.mubr.bf16.mxu0 0
        %385 = vmatmul.mubr.bf16.gmra.mrb[0].mxu0 %v286
        %v386 = vpop.f32.mrb[0].mxu0
        %v387 = vadd.f32 0.0, %v386
        %v388 = vpop.f32.mrb[0].mxu0
        %v389 = vpop.f32.mrb[0].mxu0
        %v390 = vadd.f32 0.0, %v389
        %v391 = vpop.f32.mrb[0].mxu0
        %392 = vdwg.mxu0
        %v393 = vmax.f32 %v387, 0.0
        %v394 = vmax.f32 %v390, 0.0
        %v395 = vpack.c.bf16 %v394, %v393
        %s396 = scalar_lea.vmem %s150, 128 [#allocation5]
        %v397 = vld [vmem:[%s396] sm:$0xf]
        %v398 = vld [vmem:[%s396 + $0x4] sm:$0xf]
        %v399 = vld [vmem:[%s396 + $0x8] sm:$0xf]
        %v400 = vld [vmem:[%s396 + $0xc] sm:$0xf]
        %v401 = vld [vmem:[%s396 + $0x10] sm:$0xf]
        %v402 = vld [vmem:[%s396 + $0x14] sm:$0xf]
        %v403 = vld [vmem:[%s396 + $0x18] sm:$0xf]
        %v404 = vld [vmem:[%s396 + $0x1c] sm:$0xf]
        %v405 = vld [vmem:[%s396 + $0x20] sm:$0xf]
        %v406 = vld [vmem:[%s396 + $0x24] sm:$0xf]
        %v407 = vld [vmem:[%s396 + $0x28] sm:$0xf]
        %v408 = vld [vmem:[%s396 + $0x2c] sm:$0xf]
        %v409 = vld [vmem:[%s396 + $0x30] sm:$0xf]
        %v410 = vld [vmem:[%s396 + $0x34] sm:$0xf]
        %v411 = vld [vmem:[%s396 + $0x38] sm:$0xf]
        %v412 = vld [vmem:[%s396 + $0x3c] sm:$0xf]
        %v429 = vunpack.c.l.b16 %v397
        %v430 = vunpack.c.l.b16 %v398
        %v431 = vunpack.c.l.b16 %v399
        %v432 = vunpack.c.l.b16 %v400
        %v433 = vunpack.c.l.b16 %v401
        %v434 = vunpack.c.l.b16 %v402
        %v435 = vunpack.c.l.b16 %v403
        %v436 = vunpack.c.l.b16 %v404
        %v437 = vunpack.c.l.b16 %v405
        %v438 = vunpack.c.l.b16 %v406
        %v439 = vunpack.c.l.b16 %v407
        %v440 = vunpack.c.l.b16 %v408
        %v441 = vunpack.c.l.b16 %v409
        %v442 = vunpack.c.l.b16 %v410
        %v443 = vunpack.c.l.b16 %v411
        %v444 = vunpack.c.l.b16 %v412
        %v445 = vpack.c.b16 %v430, %v429
        %v446 = vpack.c.b16 %v432, %v431
        %v447 = vpack.c.b16 %v434, %v433
        %v448 = vpack.c.b16 %v436, %v435
        %v449 = vpack.c.b16 %v438, %v437
        %v450 = vpack.c.b16 %v440, %v439
        %v451 = vpack.c.b16 %v442, %v441
        %v452 = vpack.c.b16 %v444, %v443
        %461 = vmatprep.subr.bf16.mxu0 0
        %462 = vmatpush1.bf16.msra.mxu0 %v445
        %463 = vmatprep.subr.bf16.mxu0 0
        %464 = vmatpush1.bf16.msra.mxu0 %v446
        %465 = vmatprep.subr.bf16.mxu0 0
        %466 = vmatpush1.bf16.msra.mxu0 %v447
        %467 = vmatprep.subr.bf16.mxu0 0
        %468 = vmatpush1.bf16.msra.mxu0 %v448
        %469 = vmatprep.subr.bf16.mxu0 0
        %470 = vmatpush1.bf16.msra.mxu0 %v449
        %471 = vmatprep.subr.bf16.mxu0 0
        %472 = vmatpush1.bf16.msra.mxu0 %v450
        %473 = vmatprep.subr.bf16.mxu0 0
        %474 = vmatpush1.bf16.msra.mxu0 %v451
        %475 = vmatprep.subr.bf16.mxu0 0
        %476 = vmatpush1.bf16.msra.mxu0 %v452
        %477 = vmatprep.subr.bf16.mxu0 0
        %478 = vmatpush1.bf16.msra.mxu0 0
        %479 = vmatprep.subr.bf16.mxu0 0
        %480 = vmatpush1.bf16.msra.mxu0 0
        %481 = vmatprep.subr.bf16.mxu0 0
        %482 = vmatpush1.bf16.msra.mxu0 0
        %483 = vmatprep.subr.bf16.mxu0 0
        %484 = vmatpush1.bf16.msra.mxu0 0
        %485 = vmatprep.subr.bf16.mxu0 0
        %486 = vmatpush1.bf16.msra.mxu0 0
        %487 = vmatprep.subr.bf16.mxu0 0
        %488 = vmatpush1.bf16.msra.mxu0 0
        %489 = vmatprep.subr.bf16.mxu0 0
        %490 = vmatpush1.bf16.msra.mxu0 0
        %491 = vmatprep.subr.bf16.mxu0 0
        %492 = vmatpush1.bf16.msra.mxu0 0
        %493 = vmatprep.mubr.bf16.mxu0 0
        %494 = vmatmul.mubr.bf16.gmra.mrb[0].mxu0 %v395
        %v495 = vpop.f32.mrb[0].mxu0
        %v496 = vadd.f32 0.0, %v495
        %v497 = vpop.f32.mrb[0].mxu0
        %v498 = vpop.f32.mrb[0].mxu0
        %v499 = vadd.f32 0.0, %v498
        %v500 = vpop.f32.mrb[0].mxu0
        %501 = vdwg.mxu0
        %v502 = vmax.f32 %v496, 0.0
        %v503 = vmax.f32 %v499, 0.0
        %v504 = vpack.c.bf16 %v503, %v502
        %s505 = scalar_lea.vmem %s150, 192 [#allocation5]
        %v506 = vld [vmem:[%s505] sm:$0xf]
        %v507 = vld [vmem:[%s505 + $0x4] sm:$0xf]
        %v508 = vld [vmem:[%s505 + $0x8] sm:$0xf]
        %v509 = vld [vmem:[%s505 + $0xc] sm:$0xf]
        %v510 = vld [vmem:[%s505 + $0x10] sm:$0xf]
        %v511 = vld [vmem:[%s505 + $0x14] sm:$0xf]
        %v512 = vld [vmem:[%s505 + $0x18] sm:$0xf]
        %v513 = vld [vmem:[%s505 + $0x1c] sm:$0xf]
        %v514 = vld [vmem:[%s505 + $0x20] sm:$0xf]
        %v515 = vld [vmem:[%s505 + $0x24] sm:$0xf]
        %v516 = vld [vmem:[%s505 + $0x28] sm:$0xf]
        %v517 = vld [vmem:[%s505 + $0x2c] sm:$0xf]
        %v518 = vld [vmem:[%s505 + $0x30] sm:$0xf]
        %v519 = vld [vmem:[%s505 + $0x34] sm:$0xf]
        %v520 = vld [vmem:[%s505 + $0x38] sm:$0xf]
        %v521 = vld [vmem:[%s505 + $0x3c] sm:$0xf]
        %v538 = vunpack.c.l.b16 %v506
        %v539 = vunpack.c.l.b16 %v507
        %v540 = vunpack.c.l.b16 %v508
        %v541 = vunpack.c.l.b16 %v509
        %v542 = vunpack.c.l.b16 %v510
        %v543 = vunpack.c.l.b16 %v511
        %v544 = vunpack.c.l.b16 %v512
        %v545 = vunpack.c.l.b16 %v513
        %v546 = vunpack.c.l.b16 %v514
        %v547 = vunpack.c.l.b16 %v515
        %v548 = vunpack.c.l.b16 %v516
        %v549 = vunpack.c.l.b16 %v517
        %v550 = vunpack.c.l.b16 %v518
        %v551 = vunpack.c.l.b16 %v519
        %v552 = vunpack.c.l.b16 %v520
        %v553 = vunpack.c.l.b16 %v521
        %v554 = vpack.c.b16 %v539, %v538
        %v555 = vpack.c.b16 %v541, %v540
        %v556 = vpack.c.b16 %v543, %v542
        %v557 = vpack.c.b16 %v545, %v544
        %v558 = vpack.c.b16 %v547, %v546
        %v559 = vpack.c.b16 %v549, %v548
        %v560 = vpack.c.b16 %v551, %v550
        %v561 = vpack.c.b16 %v553, %v552
        %570 = vmatprep.subr.bf16.mxu0 0
        %571 = vmatpush1.bf16.msra.mxu0 %v554
        %572 = vmatprep.subr.bf16.mxu0 0
        %573 = vmatpush1.bf16.msra.mxu0 %v555
        %574 = vmatprep.subr.bf16.mxu0 0
        %575 = vmatpush1.bf16.msra.mxu0 %v556
        %576 = vmatprep.subr.bf16.mxu0 0
        %577 = vmatpush1.bf16.msra.mxu0 %v557
        %578 = vmatprep.subr.bf16.mxu0 0
        %579 = vmatpush1.bf16.msra.mxu0 %v558
        %580 = vmatprep.subr.bf16.mxu0 0
        %581 = vmatpush1.bf16.msra.mxu0 %v559
        %582 = vmatprep.subr.bf16.mxu0 0
        %583 = vmatpush1.bf16.msra.mxu0 %v560
        %584 = vmatprep.subr.bf16.mxu0 0
        %585 = vmatpush1.bf16.msra.mxu0 %v561
        %586 = vmatprep.subr.bf16.mxu0 0
        %587 = vmatpush1.bf16.msra.mxu0 0
        %588 = vmatprep.subr.bf16.mxu0 0
        %589 = vmatpush1.bf16.msra.mxu0 0
        %590 = vmatprep.subr.bf16.mxu0 0
        %591 = vmatpush1.bf16.msra.mxu0 0
        %592 = vmatprep.subr.bf16.mxu0 0
        %593 = vmatpush1.bf16.msra.mxu0 0
        %594 = vmatprep.subr.bf16.mxu0 0
        %595 = vmatpush1.bf16.msra.mxu0 0
        %596 = vmatprep.subr.bf16.mxu0 0
        %597 = vmatpush1.bf16.msra.mxu0 0
        %598 = vmatprep.subr.bf16.mxu0 0
        %599 = vmatpush1.bf16.msra.mxu0 0
        %600 = vmatprep.subr.bf16.mxu0 0
        %601 = vmatpush1.bf16.msra.mxu0 0
        %602 = vmatprep.mubr.bf16.mxu0 0
        %603 = vmatmul.mubr.bf16.gmra.mrb[0].mxu0 %v504
        %v604 = vpop.f32.mrb[0].mxu0
        %v605 = vadd.f32 0.0, %v604
        %v606 = vpop.f32.mrb[0].mxu0
        %v607 = vpop.f32.mrb[0].mxu0
        %v608 = vadd.f32 0.0, %v607
        %v609 = vpop.f32.mrb[0].mxu0
        %610 = vdwg.mxu0
        %v611 = vmax.f32 %v605, 0.0
        %v612 = vmax.f32 %v608, 0.0
        %613 = vst [vmem:[#allocation7] sm:$0xff] %v611
        %614 = vst [vmem:[#allocation7 + $0x8] sm:$0xff] %v612
        // Predicated region
        $region41: #{tpu_custom_call.1} parent=27 // pred_check
          %p615 = pneg %p78
        $region42: #{tpu_custom_call.1} parent=27 // pred_check_branch
          %617 = sbr.rel (%p615) target = $region44
        $region43: #{tpu_custom_call.1} parent=27 // pred_region
          %s619 = ssub.s32 256, 256
          %620 = vsyncadd [#allocation4], %s619
          %s621 = sshll.u32 [#allocation7], 4
          %s622 = int_to_ptr.vmem [resolvable:$true] %s621
          %627 = dma.vmem_to_hbm [thread:$0]  %s622, 256, %s2, [#allocation4], 128, 128, 8
        $region44: #{tpu_custom_call.1} parent=27 // pred_fallthru
          _
        // Predicated region
        $region45: #{tpu_custom_call.1} parent=27 // pred_check
          %p628 = pneg %p78
        $region46: #{tpu_custom_call.1} parent=27 // pred_check_branch
          %630 = sbr.rel (%p628) target = $region48
        $region47: #{tpu_custom_call.1} parent=27 // pred_region
          %631 = dma.done [#allocation4], 256
        $region48: #{tpu_custom_call.1} parent=27 // pred_fallthru
          _
      $region28: #{tpu_custom_call.1} parent=5 // pred_fallthru
        _
      %p632 = scmp.le.s32.totalorder 2, %s13
      // Predicated region
      $region49: #{tpu_custom_call.1} parent=5 // pred_check
        %p633 = pneg %p632
      $region50: #{tpu_custom_call.1} parent=5 // pred_check_branch
        %635 = sbr.rel (%p633) target = $region52
      $region51: #{tpu_custom_call.1} parent=5 // pred_region
        %s636 = ssub.s32 %s13, 2
      $region52: #{tpu_custom_call.1} parent=5 // pred_fallthru
        _
    $region6: #{tpu_custom_call.1} parent=1 // loop_footer
      %s17 = sadd.s32 1, %s13
    $region7: #{tpu_custom_call.1} parent=1 // loop_footer_branch
      %12 = sbr.rel target = $region3
    $region8: #{tpu_custom_call.1} parent=1 // loop_exit
      _
    %637 = vsyncpa [#allocation3], 1
    %s638 = scalar_lea.sflag [#allocation3], 1
    %639 = vsyncpa %s638, 1
    %640 = vsyncpa [#allocation6], 1
    %s641 = scalar_lea.sflag [#allocation6], 1
    %642 = vsyncpa %s641, 1
    %643 = vsyncpa [#allocation4], 1
    %s644 = scalar_lea.sflag [#allocation4], 1
    %645 = vsyncpa %s644, 1

</llo_original>
